<compile_context>
chip_gen: v5e
topology: v5e:2x2
jax: 0.10.0
libtpu: 0.0.40
codegen_flags: <defaults>
</compile_context>

<pallas_src>
import jax
import jax.numpy as jnp
from jax.experimental import pallas as pl
from jax.experimental.pallas import tpu as pltpu


def _round_up(x, m):
    return ((x + m - 1) // m) * m


def _transition_kernel(x_ref, w1_ref, b1_ref, g_ref, beta_ref, w2_ref, b2_ref,
                       mu_ref):
    # All math in f32 (matches PyTorch default dtype).
    x = x_ref[...].astype(jnp.float32)

    # fc: x @ W1 + b1   (MXU).  Padded x columns / W1 rows are zero -> exact.
    h = jnp.dot(x, w1_ref[...], preferred_element_type=jnp.float32)
    h = h + b1_ref[...]                     # (tb, W) + (1, W) broadcast

    # LayerNorm over last dim (layer_width is NOT padded -> jnp.mean is exact).
    # eps = 1e-5 (torch default), affine.
    mean = jnp.mean(h, axis=-1, keepdims=True)
    cent = h - mean
    var = jnp.mean(cent * cent, axis=-1, keepdims=True)
    hn = cent * jax.lax.rsqrt(var + 1e-5)   # rsqrt -> EUP, off the VALU path
    hn = hn * g_ref[...] + beta_ref[...]

    # ReLU (VPU)
    hr = jnp.maximum(hn, 0.0)

    # fc_mu: hr @ W2 + b2   (MXU).  Padded W2 columns / b2 lanes are zero.
    mu = jnp.dot(hr, w2_ref[...], preferred_element_type=jnp.float32)
    mu = mu + b2_ref[...]

    mu_ref[...] = mu.astype(mu_ref.dtype)   # lane-dense (tb, 128·k) store


def deterministic_transition_forward(x, params, *, block_b=None):
    """x: (B, enc_dim + act_dim). Returns (mu, None) like the torch module."""
    w1, b1, gamma, beta, w2, b2 = (params["w1"], params["b1"], params["gamma"],
                                   params["beta"], params["w2"], params["b2"])
    B, d_in = x.shape
    layer_width = w1.shape[1]
    enc_dim = w2.shape[1]

    # ---- batch tile: fixed, sublane-aligned, >=2 grid steps for big B ------
    if block_b is None:
        tb = min(512, _round_up(B, 8))
    else:
        tb = block_b
    assert tb % 8 == 0, "block_b must be a multiple of 8 (f32 sublane tile)"
    B_pad = _round_up(B, tb)
    grid = (B_pad // tb,)

    # ---- lane padding: d_in and enc_dim -> multiples of 128 (exact) --------
    d_in_p = _round_up(d_in, 128)
    enc_p = _round_up(enc_dim, 128)

    x_p = jnp.pad(x, ((0, B_pad - B), (0, d_in_p - d_in)))
    w1_p = jnp.pad(w1, ((0, d_in_p - d_in), (0, 0)))
    w2_p = jnp.pad(w2, ((0, 0), (0, enc_p - enc_dim)))
    b2_p = jnp.pad(b2.reshape(1, enc_dim), ((0, 0), (0, enc_p - enc_dim)))

    # 1-row (1, N) views of biases / LN params so they are >=2D for TPU layout
    # (kept in VMEM, DMA'd once since their block index never changes).
    b1_2d = b1.reshape(1, layer_width)
    g_2d = gamma.reshape(1, layer_width)
    beta_2d = beta.reshape(1, layer_width)

    # ---- VMEM budget: actual working set + headroom, below v7x physical ----
    f32 = 4
    working_set = (
        2 * tb * d_in_p * f32            # double-buffered x tile
        + 2 * tb * enc_p * f32           # double-buffered out tile
        + d_in_p * layer_width * f32     # W1
        + layer_width * enc_p * f32      # W2
        + (3 * layer_width + enc_p) * f32  # b1, gamma, beta, b2
        + 4 * tb * layer_width * f32)    # in-kernel intermediates headroom
    vmem_limit = min(max(2 * working_set, 16 * 1024 * 1024), 48 * 1024 * 1024)

    cost = pl.CostEstimate(
        flops=2 * B_pad * (d_in_p * layer_width + layer_width * enc_p),
        transcendentals=B_pad,  # one rsqrt per row
        bytes_accessed=(B_pad * d_in_p + B_pad * enc_p
                        + d_in_p * layer_width + layer_width * enc_p) * f32,
    )

    mu_p = pl.pallas_call(
        _transition_kernel,
        out_shape=jax.ShapeDtypeStruct((B_pad, enc_p), x.dtype),
        grid_spec=pl.GridSpec(
            grid=grid,
            in_specs=[
                pl.BlockSpec((tb, d_in_p), lambda i: (i, 0)),            # x
                pl.BlockSpec((d_in_p, layer_width), lambda i: (0, 0)),   # W1
                pl.BlockSpec((1, layer_width), lambda i: (0, 0)),        # b1
                pl.BlockSpec((1, layer_width), lambda i: (0, 0)),        # gamma
                pl.BlockSpec((1, layer_width), lambda i: (0, 0)),        # beta
                pl.BlockSpec((layer_width, enc_p), lambda i: (0, 0)),    # W2
                pl.BlockSpec((1, enc_p), lambda i: (0, 0)),              # b2
            ],
            out_specs=pl.BlockSpec((tb, enc_p), lambda i: (i, 0)),
        ),
        compiler_params=pltpu.CompilerParams(
            dimension_semantics=("parallel",),
            vmem_limit_bytes=int(vmem_limit)),
        cost_estimate=cost,
    )(x_p, w1_p, b1_2d, g_2d, beta_2d, w2_p, b2_p)

    mu = mu_p[:B, :enc_dim]
    sigma = None  # deterministic model
    return mu, sigma


def init_params(key, encoder_feature_dim, action_shape, layer_width):
    """Deterministic synthetic init (torch-Linear-style uniform bounds)."""
    d_in = encoder_feature_dim + action_shape
    k1, k2, k3, k4 = jax.random.split(key, 4)
    bound1 = 1.0 / jnp.sqrt(jnp.float32(d_in))
    bound2 = 1.0 / jnp.sqrt(jnp.float32(layer_width))
    # Note: stored already transposed relative to torch (in_dim, out_dim).
    params = {
        "w1": jax.random.uniform(k1, (d_in, layer_width), jnp.float32,
                                 -bound1, bound1),
        "b1": jax.random.uniform(k2, (layer_width,), jnp.float32,
                                 -bound1, bound1),
        "gamma": jnp.ones((layer_width,), jnp.float32),   # LayerNorm weight
        "beta": jnp.zeros((layer_width,), jnp.float32),   # LayerNorm bias
        "w2": jax.random.uniform(k3, (layer_width, encoder_feature_dim),
                                 jnp.float32, -bound2, bound2),
        "b2": jax.random.uniform(k4, (encoder_feature_dim,), jnp.float32,
                                 -bound2, bound2),
    }
    return params


def _reference_forward(x, params):
    """Pure-JAX reference for correctness checking."""
    h = x @ params["w1"] + params["b1"]
    mean = jnp.mean(h, axis=-1, keepdims=True)
    var = jnp.mean((h - mean) ** 2, axis=-1, keepdims=True)
    hn = (h - mean) * jax.lax.rsqrt(var + 1e-5)
    hn = hn * params["gamma"] + params["beta"]
    hr = jnp.maximum(hn, 0.0)
    return hr @ params["w2"] + params["b2"]


if __name__ == "__main__":
    # Small shapes consistent with the module's forward:
    #   encoder_feature_dim=32, action_shape=8, layer_width=64, batch=8
    encoder_feature_dim = 32
    action_shape = 8
    layer_width = 64
    batch = 8

    key = jax.random.PRNGKey(0)
    kx, kp = jax.random.split(key)
    x = jax.random.normal(
        kx, (batch, encoder_feature_dim + action_shape), jnp.float32)
    params = init_params(kp, encoder_feature_dim, action_shape, layer_width)

    mu, sigma = deterministic_transition_forward(x, params)
    mu = jax.block_until_ready(mu)
    assert sigma is None
    assert mu.shape == (batch, encoder_feature_dim)
    assert mu.dtype == jnp.float32

    ref = _reference_forward(x, params)
    assert jnp.allclose(mu, ref, atol=1e-5, rtol=1e-5), "mismatch vs reference"

    # Also check a batch that is not a multiple of the tile / 8 (padding path)
    # and a larger batch that exercises a multi-step grid with block_b.
    x2 = jax.random.normal(kx, (1037, encoder_feature_dim + action_shape),
                           jnp.float32)
    mu2, _ = deterministic_transition_forward(x2, params, block_b=256)
    mu2 = jax.block_until_ready(mu2)
    ref2 = _reference_forward(x2, params)
    assert mu2.shape == (1037, encoder_feature_dim)
    assert jnp.allclose(mu2, ref2, atol=1e-5, rtol=1e-5), "mismatch (big B)"

    print("KERNEL_OK")
</pallas_src>

<mosaic_0001>
module attributes {stable_mosaic.version = 11 : i64} {
  func.func @_transition_kernel(%arg0: i32, %arg1: memref<8x128xf32, #tpu.memory_space<vmem>>, %arg2: memref<128x64xf32, #tpu.memory_space<vmem>>, %arg3: memref<1x64xf32, #tpu.memory_space<vmem>>, %arg4: memref<1x64xf32, #tpu.memory_space<vmem>>, %arg5: memref<1x64xf32, #tpu.memory_space<vmem>>, %arg6: memref<64x128xf32, #tpu.memory_space<vmem>>, %arg7: memref<1x128xf32, #tpu.memory_space<vmem>>, %arg8: memref<8x128xf32, #tpu.memory_space<vmem>>) attributes {dimension_semantics = [#tpu.dimension_semantics<parallel>], iteration_bounds = array<i64: 1>, scalar_prefetch = 0 : i64, scratch_operands = 0 : i64, tpu.core_type = #tpu.core_type<tc>, window_params = [{transform_indices = @transform_0, window_bounds = array<i64: 8, 128>}, {pipeline_mode = #tpu.pipeline_mode<synchronous>, transform_indices = @transform_1, window_bounds = array<i64: 128, 64>}, {pipeline_mode = #tpu.pipeline_mode<synchronous>, transform_indices = @transform_2, window_bounds = array<i64: 1, 64>}, {pipeline_mode = #tpu.pipeline_mode<synchronous>, transform_indices = @transform_3, window_bounds = array<i64: 1, 64>}, {pipeline_mode = #tpu.pipeline_mode<synchronous>, transform_indices = @transform_4, window_bounds = array<i64: 1, 64>}, {pipeline_mode = #tpu.pipeline_mode<synchronous>, transform_indices = @transform_5, window_bounds = array<i64: 64, 128>}, {pipeline_mode = #tpu.pipeline_mode<synchronous>, transform_indices = @transform_6, window_bounds = array<i64: 1, 128>}, {transform_indices = @transform_7, window_bounds = array<i64: 8, 128>}]} {
    %c0 = arith.constant 0 : index
    %c0_0 = arith.constant 0 : index
    %0 = vector.load %arg1[%c0, %c0_0] : memref<8x128xf32, #tpu.memory_space<vmem>>, vector<8x128xf32>
    %c0_1 = arith.constant 0 : index
    %c0_2 = arith.constant 0 : index
    %1 = vector.load %arg2[%c0_1, %c0_2] : memref<128x64xf32, #tpu.memory_space<vmem>>, vector<128x64xf32>
    %cst = arith.constant dense<0.000000e+00> : vector<8x64xf32>
    %2 = tpu.matmul %0, %1, %cst {dimension_numbers = #tpu.dot_dimension_numbers<[1], [0], [0], [1], [0, 0, 1, 1], [], []>} : vector<8x128xf32>, vector<128x64xf32>, vector<8x64xf32> -> vector<8x64xf32>
    %c0_3 = arith.constant 0 : index
    %c0_4 = arith.constant 0 : index
    %3 = vector.load %arg3[%c0_3, %c0_4] : memref<1x64xf32, #tpu.memory_space<vmem>>, vector<1x64xf32>
    %4 = vector.broadcast %3 : vector<1x64xf32> to vector<8x64xf32>
    %5 = arith.addf %2, %4 : vector<8x64xf32>
    %cst_5 = arith.constant dense<0.000000e+00> : vector<8xf32>
    %6 = vector.multi_reduction <add>, %5, %cst_5 [1] : vector<8x64xf32> to vector<8xf32>
    %7 = vector.shape_cast %6 : vector<8xf32> to vector<8x1xf32>
    %cst_6 = arith.constant 6.400000e+01 : f32
    %8 = vector.broadcast %cst_6 : f32 to vector<8x1xf32>
    %9 = arith.divf %7, %8 : vector<8x1xf32>
    %10 = vector.broadcast %9 : vector<8x1xf32> to vector<8x64xf32>
    %11 = arith.subf %5, %10 : vector<8x64xf32>
    %12 = arith.mulf %11, %11 : vector<8x64xf32>
    %cst_7 = arith.constant dense<0.000000e+00> : vector<8xf32>
    %13 = vector.multi_reduction <add>, %12, %cst_7 [1] : vector<8x64xf32> to vector<8xf32>
    %14 = vector.shape_cast %13 : vector<8xf32> to vector<8x1xf32>
    %cst_8 = arith.constant 6.400000e+01 : f32
    %15 = vector.broadcast %cst_8 : f32 to vector<8x1xf32>
    %16 = arith.divf %14, %15 : vector<8x1xf32>
    %cst_9 = arith.constant 9.99999974E-6 : f32
    %17 = vector.broadcast %cst_9 : f32 to vector<8x1xf32>
    %18 = arith.addf %16, %17 : vector<8x1xf32>
    %19 = math.rsqrt %18 : vector<8x1xf32>
    %20 = vector.broadcast %19 : vector<8x1xf32> to vector<8x64xf32>
    %21 = arith.mulf %11, %20 : vector<8x64xf32>
    %c0_10 = arith.constant 0 : index
    %c0_11 = arith.constant 0 : index
    %22 = vector.load %arg4[%c0_10, %c0_11] : memref<1x64xf32, #tpu.memory_space<vmem>>, vector<1x64xf32>
    %23 = vector.broadcast %22 : vector<1x64xf32> to vector<8x64xf32>
    %24 = arith.mulf %21, %23 : vector<8x64xf32>
    %c0_12 = arith.constant 0 : index
    %c0_13 = arith.constant 0 : index
    %25 = vector.load %arg5[%c0_12, %c0_13] : memref<1x64xf32, #tpu.memory_space<vmem>>, vector<1x64xf32>
    %26 = vector.broadcast %25 : vector<1x64xf32> to vector<8x64xf32>
    %27 = arith.addf %24, %26 : vector<8x64xf32>
    %cst_14 = arith.constant 0.000000e+00 : f32
    %28 = vector.broadcast %cst_14 : f32 to vector<8x64xf32>
    %29 = arith.maximumf %27, %28 : vector<8x64xf32>
    %c0_15 = arith.constant 0 : index
    %c0_16 = arith.constant 0 : index
    %30 = vector.load %arg6[%c0_15, %c0_16] : memref<64x128xf32, #tpu.memory_space<vmem>>, vector<64x128xf32>
    %cst_17 = arith.constant dense<0.000000e+00> : vector<8x128xf32>
    %31 = tpu.matmul %29, %30, %cst_17 {dimension_numbers = #tpu.dot_dimension_numbers<[1], [0], [0], [1], [0, 0, 1, 1], [], []>} : vector<8x64xf32>, vector<64x128xf32>, vector<8x128xf32> -> vector<8x128xf32>
    %c0_18 = arith.constant 0 : index
    %c0_19 = arith.constant 0 : index
    %32 = vector.load %arg7[%c0_18, %c0_19] : memref<1x128xf32, #tpu.memory_space<vmem>>, vector<1x128xf32>
    %33 = vector.broadcast %32 : vector<1x128xf32> to vector<8x128xf32>
    %34 = arith.addf %31, %33 : vector<8x128xf32>
    %c0_20 = arith.constant 0 : index
    %c0_21 = arith.constant 0 : index
    %35 = vector.load %arg8[%c0_20, %c0_21] : memref<8x128xf32, #tpu.memory_space<vmem>>, vector<8x128xf32>
    tpu.vector_store %arg8[%c0_20, %c0_21], %34 {strides = array<i32>} : memref<8x128xf32, #tpu.memory_space<vmem>>, vector<8x128xf32>,
    return
  }
  func.func @transform_0(%arg0: i32) -> (i32, i32) {
    %c0_i32 = arith.constant 0 : i32
    %c0_i32_0 = arith.constant 0 : i32
    return %arg0, %c0_i32 : i32, i32
  }
  func.func @transform_1(%arg0: i32) -> (i32, i32) {
    %c0_i32 = arith.constant 0 : i32
    %c0_i32_0 = arith.constant 0 : i32
    %c0_i32_1 = arith.constant 0 : i32
    return %c0_i32, %c0_i32_0 : i32, i32
  }
  func.func @transform_2(%arg0: i32) -> (i32, i32) {
    %c0_i32 = arith.constant 0 : i32
    %c0_i32_0 = arith.constant 0 : i32
    %c0_i32_1 = arith.constant 0 : i32
    return %c0_i32, %c0_i32_0 : i32, i32
  }
  func.func @transform_3(%arg0: i32) -> (i32, i32) {
    %c0_i32 = arith.constant 0 : i32
    %c0_i32_0 = arith.constant 0 : i32
    %c0_i32_1 = arith.constant 0 : i32
    return %c0_i32, %c0_i32_0 : i32, i32
  }
  func.func @transform_4(%arg0: i32) -> (i32, i32) {
    %c0_i32 = arith.constant 0 : i32
    %c0_i32_0 = arith.constant 0 : i32
    %c0_i32_1 = arith.constant 0 : i32
    return %c0_i32, %c0_i32_0 : i32, i32
  }
  func.func @transform_5(%arg0: i32) -> (i32, i32) {
    %c0_i32 = arith.constant 0 : i32
    %c0_i32_0 = arith.constant 0 : i32
    %c0_i32_1 = arith.constant 0 : i32
    return %c0_i32, %c0_i32_0 : i32, i32
  }
  func.func @transform_6(%arg0: i32) -> (i32, i32) {
    %c0_i32 = arith.constant 0 : i32
    %c0_i32_0 = arith.constant 0 : i32
    %c0_i32_1 = arith.constant 0 : i32
    return %c0_i32, %c0_i32_0 : i32, i32
  }
  func.func @transform_7(%arg0: i32) -> (i32, i32) {
    %c0_i32 = arith.constant 0 : i32
    %c0_i32_0 = arith.constant 0 : i32
    return %arg0, %c0_i32 : i32, i32
  }
}

</mosaic_0001>

<llo_original>
// kernel: tpu_custom_call.1
$region0: #{tpu_custom_call.1}
  #allocation0 [shape = 'u32[]', space=smem, size = 0x4, offset = 0x4, fixed_abs, tag = 'smem constant byte address 0x4 - core index']
  #allocation1 [shape = 'u32[72,128]{1,0:T(1,128)}', space=vmem, size = 0x9000, scoped, tag = 'internal scratch']
  %s0 = inlined_call_operand.vmem [shape: f32[8,128], index: 0, kind: input, shape index: {}]
  %s1 = inlined_call_operand.vmem [shape: f32[128,64], index: 1, kind: input, shape index: {}]
  %s2 = inlined_call_operand.vmem [shape: f32[1,64], index: 2, kind: input, shape index: {}]
  %s3 = inlined_call_operand.vmem [shape: f32[1,64], index: 3, kind: input, shape index: {}]
  %s4 = inlined_call_operand.vmem [shape: f32[1,64], index: 4, kind: input, shape index: {}]
  %s5 = inlined_call_operand.vmem [shape: f32[64,128], index: 5, kind: input, shape index: {}]
  %s6 = inlined_call_operand.vmem [shape: f32[1,128], index: 6, kind: input, shape index: {}]
  %s7 = inlined_call_operand.hbm [shape: f32[8,128], index: 7, kind: output, shape index: {}]
  %s8 = sld [smem:[#allocation0]]
  $region38: #{tpu_custom_call.1} parent=0
    _
  %s10 = ssub.s32 1, %s8
  %s11 = scalar_select 0, %s10, %s8
  $region1: #{tpu_custom_call.1} parent=0
    #allocation2 [shape = 'u8[4096]{0}', space=vmem, size = 0x1000, scoped, tag = 'output window, operand 0, single buffered']
    #allocation3 [shape = 's32[1]{0}', space=sflag, size = 0x4, scoped, tag = 'scoped memory for tpu_custom_call.1']
    %12 = vsyncpa [#allocation3], 0
    // Predicated region
    $region2: #{tpu_custom_call.1} parent=1 // pred_check
      _
    $region3: #{tpu_custom_call.1} parent=1 // pred_check_branch
      %14 = sbr.rel (0) target = $region5
    $region4: #{tpu_custom_call.1} parent=1 // pred_region
      _
    $region5: #{tpu_custom_call.1} parent=1 // pred_fallthru
      _
    // Predicated region
    $region6: #{tpu_custom_call.1} parent=1 // pred_check
      _
    $region7: #{tpu_custom_call.1} parent=1 // pred_check_branch
      %16 = sbr.rel (0) target = $region9
    $region8: #{tpu_custom_call.1} parent=1 // pred_region
      _
    $region9: #{tpu_custom_call.1} parent=1 // pred_fallthru
      _
    // Predicated region
    $region10: #{tpu_custom_call.1} parent=1 // pred_check
      _
    $region11: #{tpu_custom_call.1} parent=1 // pred_check_branch
      %18 = sbr.rel (0) target = $region13
    $region12: #{tpu_custom_call.1} parent=1 // pred_region
      _
    $region13: #{tpu_custom_call.1} parent=1 // pred_fallthru
      _
    // Predicated region
    $region14: #{tpu_custom_call.1} parent=1 // pred_check
      _
    $region15: #{tpu_custom_call.1} parent=1 // pred_check_branch
      %20 = sbr.rel (0) target = $region17
    $region16: #{tpu_custom_call.1} parent=1 // pred_region
      _
    $region17: #{tpu_custom_call.1} parent=1 // pred_fallthru
      _
    // Predicated region
    $region18: #{tpu_custom_call.1} parent=1 // pred_check
      _
    $region19: #{tpu_custom_call.1} parent=1 // pred_check_branch
      %22 = sbr.rel (0) target = $region21
    $region20: #{tpu_custom_call.1} parent=1 // pred_region
      _
    $region21: #{tpu_custom_call.1} parent=1 // pred_fallthru
      _
    // Predicated region
    $region22: #{tpu_custom_call.1} parent=1 // pred_check
      _
    $region23: #{tpu_custom_call.1} parent=1 // pred_check_branch
      %24 = sbr.rel (0) target = $region25
    $region24: #{tpu_custom_call.1} parent=1 // pred_region
      _
    $region25: #{tpu_custom_call.1} parent=1 // pred_fallthru
      _
    // Predicated region
    $region26: #{tpu_custom_call.1} parent=1 // pred_check
      _
    $region27: #{tpu_custom_call.1} parent=1 // pred_check_branch
      %26 = sbr.rel (0) target = $region29
    $region28: #{tpu_custom_call.1} parent=1 // pred_region
      _
    $region29: #{tpu_custom_call.1} parent=1 // pred_fallthru
      _
    %v27 = vld [vmem:[%s0] sm:$0xff]
    %v28 = vld [vmem:[%s1] sm:$0xff]
    %v29 = vld [vmem:[%s1 + $0x8] sm:$0xff]
    %v30 = vld [vmem:[%s1 + $0x10] sm:$0xff]
    %v31 = vld [vmem:[%s1 + $0x18] sm:$0xff]
    %v32 = vld [vmem:[%s1 + $0x20] sm:$0xff]
    %v33 = vld [vmem:[%s1 + $0x28] sm:$0xff]
    %v34 = vld [vmem:[%s1 + $0x30] sm:$0xff]
    %v35 = vld [vmem:[%s1 + $0x38] sm:$0xff]
    %v36 = vld [vmem:[%s1 + $0x40] sm:$0xff]
    %v37 = vld [vmem:[%s1 + $0x48] sm:$0xff]
    %v38 = vld [vmem:[%s1 + $0x50] sm:$0xff]
    %v39 = vld [vmem:[%s1 + $0x58] sm:$0xff]
    %v40 = vld [vmem:[%s1 + $0x60] sm:$0xff]
    %v41 = vld [vmem:[%s1 + $0x68] sm:$0xff]
    %v42 = vld [vmem:[%s1 + $0x70] sm:$0xff]
    %v43 = vld [vmem:[%s1 + $0x78] sm:$0xff]
    %v44 = vld [vmem:[%s2] sm:$0x1]
    %v46 = vperm.slane %v44, 0
    %48 = vmatpush.msra.mxu0 %v43
    %49 = vmatpush.msra.mxu0 %v42
    %50 = vmatpush.msra.mxu0 %v41
    %51 = vmatpush.msra.mxu0 %v40
    %52 = vmatpush.msra.mxu0 %v39
    %53 = vmatpush.msra.mxu0 %v38
    %54 = vmatpush.msra.mxu0 %v37
    %55 = vmatpush.msra.mxu0 %v36
    %56 = vmatpush.msra.mxu0 %v35
    %57 = vmatpush.msra.mxu0 %v34
    %58 = vmatpush.msra.mxu0 %v33
    %59 = vmatpush.msra.mxu0 %v32
    %60 = vmatpush.msra.mxu0 %v31
    %61 = vmatpush.msra.mxu0 %v30
    %62 = vmatpush.msra.mxu0 %v29
    %63 = vmatpush.msra.mxu0 %v28
    %64 = vmatmul.f32.gmra.mxu0 %v27
    %v65 = vpop.f32.mrf.mxu0
    %v66 = vadd.f32 %v46, %v65
    %67 = vdwg.mxu0
    %vm68 = vcmask 523264
    %v69 = vsel %vm68, %v66, 0.0
    %70 = vadd.xlane.f32.xlu0 %v69
    %v71 = vpop.xlane.xlu0 %70
    %v72 = vrcp.pop 64.0
    %v73 = vmul.f32 64.0, %v72
    %v74 = vsub.f32 1.0, %v73
    %v75 = vmul.f32 %v72, %v74
    %v76 = vadd.f32 %v72, %v75
    %vm77 = vweird.f32 %v72
    %v78 = vsel %vm77, %v72, %v76
    %v79 = vmul.f32 %v71, %v78
    %v80 = vsub.f32 %v66, %v79
    %v81 = vmul.f32 %v80, %v80
    %v82 = vsel %vm68, %v81, 0.0
    %83 = vadd.xlane.f32.xlu0 %v82
    %v84 = vpop.xlane.xlu0 %83
    %v85 = vmul.f32 %v84, %v78
    %v86 = vadd.f32 %v85, 1e-05
    %v87 = vrsqrt.pop %v86
    %v88 = vmul.f32 %v87, %v86
    %v89 = vmul.f32 %v88, %v87
    %v90 = vmul.f32 0.5, %v89
    %v91 = vsub.f32 1.5, %v90
    %v92 = vmul.f32 %v87, %v91
    %vm93 = vweird.f32 %v86
    %vm94 = vweird.f32 %v87
    %vm95 = vmor %vm93, %vm94
    %v96 = vsel %vm95, %v87, %v92
    %v97 = vmul.f32 %v80, %v96
    %v98 = vld [vmem:[%s3] sm:$0x1]
    %v100 = vperm.slane %v98, 0
    %v102 = vmul.f32 %v97, %v100
    %v103 = vld [vmem:[%s4] sm:$0x1]
    %v105 = vperm.slane %v103, 0
    %v107 = vadd.f32 %v102, %v105
    %v108 = vmax.f32 %v107, 0.0
    %v109 = vld [vmem:[%s5] sm:$0xff]
    %v110 = vld [vmem:[%s5 + $0x8] sm:$0xff]
    %v111 = vld [vmem:[%s5 + $0x10] sm:$0xff]
    %v112 = vld [vmem:[%s5 + $0x18] sm:$0xff]
    %v113 = vld [vmem:[%s5 + $0x20] sm:$0xff]
    %v114 = vld [vmem:[%s5 + $0x28] sm:$0xff]
    %v115 = vld [vmem:[%s5 + $0x30] sm:$0xff]
    %v116 = vld [vmem:[%s5 + $0x38] sm:$0xff]
    %v117 = vld [vmem:[%s6] sm:$0x1]
    %v119 = vperm.slane %v117, 0
    %v122 = vsel %vm68, %v108, 0
    %124 = vmatpush.msra.mxu0 0.0
    %125 = vmatpush.msra.mxu0 0.0
    %126 = vmatpush.msra.mxu0 0.0
    %127 = vmatpush.msra.mxu0 0.0
    %128 = vmatpush.msra.mxu0 0.0
    %129 = vmatpush.msra.mxu0 0.0
    %130 = vmatpush.msra.mxu0 0.0
    %131 = vmatpush.msra.mxu0 0.0
    %132 = vmatpush.msra.mxu0 %v116
    %133 = vmatpush.msra.mxu0 %v115
    %134 = vmatpush.msra.mxu0 %v114
    %135 = vmatpush.msra.mxu0 %v113
    %136 = vmatpush.msra.mxu0 %v112
    %137 = vmatpush.msra.mxu0 %v111
    %138 = vmatpush.msra.mxu0 %v110
    %139 = vmatpush.msra.mxu0 %v109
    %140 = vmatmul.f32.gmra.mxu0 %v122
    %v141 = vpop.f32.mrf.mxu0
    %v142 = vadd.f32 %v119, %v141
    %143 = vdwg.mxu0
    %144 = vst [vmem:[#allocation2] sm:$0xff] %v142
    // Predicated region
    $region30: #{tpu_custom_call.1} parent=1 // pred_check
      _
    $region31: #{tpu_custom_call.1} parent=1 // pred_check_branch
      %146 = sbr.rel (0) target = $region33
    $region32: #{tpu_custom_call.1} parent=1 // pred_region
      %148 = vsyncadd [#allocation3], 0
      %s150 = sshll.u32 [#allocation2], 4
      %s151 = int_to_ptr.vmem [resolvable:$true] %s150
      %s152 = sshll.u32 %s7, 4
      %s153 = int_to_ptr.hbm [resolvable:$true] %s152
      %155 = dma.vmem_to_hbm [thread:$0]  %s151, 128, %s153, [#allocation3]
    $region33: #{tpu_custom_call.1} parent=1 // pred_fallthru
      _
    // Predicated region
    $region34: #{tpu_custom_call.1} parent=1 // pred_check
      _
    $region35: #{tpu_custom_call.1} parent=1 // pred_check_branch
      %157 = sbr.rel (0) target = $region37
    $region36: #{tpu_custom_call.1} parent=1 // pred_region
      %159 = dma.done [#allocation3], 128
    $region37: #{tpu_custom_call.1} parent=1 // pred_fallthru
      _
    %160 = vsyncpa [#allocation3], 1

</llo_original>
